<compile_context>
chip_gen: v5e
topology: v5e:2x2
jax: 0.10.0
libtpu: 0.0.40
codegen_flags: <defaults>
</compile_context>

<pallas_src>
import jax
import jax.numpy as jnp
from jax.experimental import pallas as pl
from jax.experimental.pallas import tpu as pltpu

_LANE = 128
_SUBLANE = 8
# 2048 rows x 128 lanes x 4 B (f32 out) = 1 MiB per output block; with default
# double buffering (in + out) this stays well under even v5e's 16 MiB scoped VMEM.
_TARGET_BLOCK_ROWS = 2048


def _round_up(x, m):
    return ((x + m - 1) // m) * m


def _make_convert_kernel(scale):
    """Elementwise convert-and-scale kernel. `scale` is a compile-time constant."""
    if scale == 1.0:
        # Pure dtype cast: keep the load -> cast -> store chain tight.
        def kernel(x_ref, o_ref):
            o_ref[...] = x_ref[...].astype(o_ref.dtype)
    else:
        def kernel(x_ref, o_ref):
            x = x_ref[...].astype(jnp.float32)
            o_ref[...] = (x * scale).astype(o_ref.dtype)
    return kernel


def _choose_block_rows(rows, in_itemsize):
    """Pick a lane-dense block height: big (~1 MiB out/block), sublane-aligned
    for packed input dtypes, and with >= 2 grid steps when the input allows it
    (so both v7x TensorCores get work)."""
    pack = max(1, 4 // in_itemsize)      # uint8 -> 4, bf16 -> 2, f32 -> 1
    align = _SUBLANE * pack              # native packed sublane tile: 32/16/8
    if rows <= align:
        return _round_up(rows, _SUBLANE)
    target = min(_TARGET_BLOCK_ROWS, _round_up(pl.cdiv(rows, 2), align))
    return min(target, _round_up(rows, align))


def convert_image_dtype(image, dtype=jnp.float32):
    """Pallas implementation of torchvision convert_image_dtype for float targets."""
    dtype = jnp.dtype(dtype)
    if not jnp.issubdtype(dtype, jnp.floating):
        # TODO(synk): float->int and int->int target branches (overflow-guarded
        # integer rescaling) of convert_image_dtype are not implemented.
        raise NotImplementedError("Only floating-point target dtypes are supported.")

    if jnp.issubdtype(image.dtype, jnp.floating):
        scale = 1.0  # pure dtype cast
    else:
        scale = 1.0 / float(jnp.iinfo(image.dtype).max)

    orig_shape = image.shape
    n = image.size
    if n == 0:
        return jnp.zeros(orig_shape, dtype)

    flat = image.reshape(-1)

    # Pad only the lane remainder (usually zero for real image shapes); the
    # row (sublane) remainder is left ragged and masked by Pallas.
    lane_pad = (-n) % _LANE
    if lane_pad:
        flat = jnp.pad(flat, (0, lane_pad))
    rows = (n + lane_pad) // _LANE
    x2d = flat.reshape(rows, _LANE)

    block_rows = _choose_block_rows(rows, jnp.dtype(image.dtype).itemsize)
    grid = (pl.cdiv(rows, block_rows),)

    out2d = pl.pallas_call(
        _make_convert_kernel(scale),
        out_shape=jax.ShapeDtypeStruct((rows, _LANE), dtype),
        grid=grid,
        in_specs=[pl.BlockSpec((block_rows, _LANE), lambda i: (i, 0))],
        out_specs=pl.BlockSpec((block_rows, _LANE), lambda i: (i, 0)),
        compiler_params=pltpu.CompilerParams(dimension_semantics=("parallel",)),
    )(x2d)

    if lane_pad:
        return out2d.reshape(-1)[:n].reshape(orig_shape)
    return out2d.reshape(orig_shape)


if __name__ == "__main__":
    key = jax.random.PRNGKey(0)

    # 1) Typical use: uint8 image (NCHW) -> float32 in [0, 1]; n % 128 == 0,
    #    so the wrapper adds no padding and no extra HBM pass.
    x_u8 = jax.random.randint(key, (2, 4, 16, 16), 0, 256, dtype=jnp.int32).astype(
        jnp.uint8
    )
    out = jax.block_until_ready(convert_image_dtype(x_u8, jnp.float32))
    ref = x_u8.astype(jnp.float32) / 255.0
    assert out.shape == x_u8.shape and out.dtype == jnp.float32
    assert jnp.max(jnp.abs(out - ref)) < 1e-6

    # 2) Ragged case: element count not a multiple of 128 (exercises lane pad
    #    + masked last block).
    k2 = jax.random.fold_in(key, 1)
    x_odd = jax.random.randint(k2, (3, 3, 5, 7), 0, 256, dtype=jnp.int32).astype(
        jnp.uint8
    )
    out_odd = jax.block_until_ready(convert_image_dtype(x_odd, jnp.float32))
    ref_odd = x_odd.astype(jnp.float32) / 255.0
    assert out_odd.shape == x_odd.shape and out_odd.dtype == jnp.float32
    assert jnp.max(jnp.abs(out_odd - ref_odd)) < 1e-6

    # 3) float -> float branch (scale == 1.0 fast path, pure cast).
    k3 = jax.random.fold_in(key, 2)
    x_f32 = jax.random.uniform(k3, (2, 4, 16, 16), dtype=jnp.float32)
    out_f = jax.block_until_ready(convert_image_dtype(x_f32, jnp.float32))
    assert out_f.shape == x_f32.shape and out_f.dtype == jnp.float32
    assert jnp.max(jnp.abs(out_f - x_f32)) == 0.0

    print("KERNEL_OK")
</pallas_src>

<mosaic_0001>
module attributes {stable_mosaic.version = 11 : i64} {
  func.func @kernel(%arg0: i32, %arg1: memref<16x128xi8, #tpu.memory_space<vmem>>, %arg2: memref<16x128xf32, #tpu.memory_space<vmem>>) attributes {dimension_semantics = [#tpu.dimension_semantics<parallel>], iteration_bounds = array<i64: 1>, scalar_prefetch = 0 : i64, scratch_operands = 0 : i64, tpu.core_type = #tpu.core_type<tc>, window_params = [{transform_indices = @transform_0, window_bounds = array<i64: 16, 128>}, {transform_indices = @transform_1, window_bounds = array<i64: 16, 128>}]} {
    %c0 = arith.constant 0 : index
    %c0_0 = arith.constant 0 : index
    %0 = vector.load %arg1[%c0, %c0_0] : memref<16x128xi8, #tpu.memory_space<vmem>>, vector<16x128xi8>
    %1 = arith.uitofp %0 : vector<16x128xi8> to vector<16x128xf32>
    %cst = arith.constant 0.00392156886 : f32
    %2 = vector.broadcast %cst : f32 to vector<16x128xf32>
    %3 = arith.mulf %1, %2 : vector<16x128xf32>
    %c0_1 = arith.constant 0 : index
    %c0_2 = arith.constant 0 : index
    %4 = vector.load %arg2[%c0_1, %c0_2] : memref<16x128xf32, #tpu.memory_space<vmem>>, vector<16x128xf32>
    tpu.vector_store %arg2[%c0_1, %c0_2], %3 {strides = array<i32>} : memref<16x128xf32, #tpu.memory_space<vmem>>, vector<16x128xf32>,
    return
  }
  func.func @transform_0(%arg0: i32) -> (i32, i32) {
    %c0_i32 = arith.constant 0 : i32
    %c0_i32_0 = arith.constant 0 : i32
    return %arg0, %c0_i32 : i32, i32
  }
  func.func @transform_1(%arg0: i32) -> (i32, i32) {
    %c0_i32 = arith.constant 0 : i32
    %c0_i32_0 = arith.constant 0 : i32
    return %arg0, %c0_i32 : i32, i32
  }
}

</mosaic_0001>

<llo_original>
// kernel: tpu_custom_call.1
$region0: #{tpu_custom_call.1}
  #allocation0 [shape = 'u32[]', space=smem, size = 0x4, offset = 0x4, fixed_abs, tag = 'smem constant byte address 0x4 - core index']
  #allocation1 [shape = 'u32[72,128]{1,0:T(1,128)}', space=vmem, size = 0x9000, scoped, tag = 'internal scratch']
  %s0 = inlined_call_operand.hbm [shape: u8[16,128], index: 0, kind: input, shape index: {}]
  %s1 = inlined_call_operand.hbm [shape: f32[16,128], index: 1, kind: output, shape index: {}]
  %s2 = sld [smem:[#allocation0]]
  $region18: #{tpu_custom_call.1} parent=0
    _
  %s4 = ssub.s32 1, %s2
  %s5 = scalar_select 0, %s4, %s2
  $region1: #{tpu_custom_call.1} parent=0
    #allocation2 [shape = 'u8[2048]{0}', space=vmem, size = 0x800, scoped, tag = 'input window, operand 0, single buffered']
    #allocation3 [shape = 's32[1]{0}', space=sflag, size = 0x4, scoped, tag = 'scoped memory for tpu_custom_call.1']
    #allocation4 [shape = 's32[1]{0}', space=sflag, size = 0x4, scoped, tag = 'scoped memory for tpu_custom_call.1']
    #allocation5 [shape = 'u8[8192]{0}', space=vmem, size = 0x2000, scoped, tag = 'output window, operand 0, single buffered']
    %6 = vsyncpa [#allocation3], 0
    %7 = vsyncpa [#allocation4], 0
    // Predicated region
    $region2: #{tpu_custom_call.1} parent=1 // pred_check
      _
    $region3: #{tpu_custom_call.1} parent=1 // pred_check_branch
      %9 = sbr.rel (0) target = $region5
    $region4: #{tpu_custom_call.1} parent=1 // pred_region
      %11 = vsyncadd [#allocation3], 0
      %s12 = sshll.u32 %s0, 4
      %s13 = int_to_ptr.hbm [resolvable:$true] %s12
      %s14 = sshll.u32 [#allocation2], 4
      %s15 = int_to_ptr.vmem [resolvable:$true] %s14
      %20 = dma.hbm_to_vmem [thread:$0]  %s13, 64, %s15, [#allocation3], 32, 32, 2
    $region5: #{tpu_custom_call.1} parent=1 // pred_fallthru
      _
    // Predicated region
    $region6: #{tpu_custom_call.1} parent=1 // pred_check
      _
    $region7: #{tpu_custom_call.1} parent=1 // pred_check_branch
      %22 = sbr.rel (0) target = $region9
    $region8: #{tpu_custom_call.1} parent=1 // pred_region
      %24 = dma.done [#allocation3], 64
    $region9: #{tpu_custom_call.1} parent=1 // pred_fallthru
      _
    %v25 = vld [vmem:[#allocation2] sm:$0x3]
    %v26 = vld [vmem:[#allocation2 + $0x2] sm:$0x3]
    %v27 = vunpack.c.0.s8 %v25
    %v28 = vunpack.c.0.s8 %v26
    %v29 = vand.u32 %v27, 255
    %v30 = vand.u32 %v28, 255
    %v31 = vcvt.s32.f32 %v29
    %v32 = vcvt.s32.f32 %v30
    %v33 = vmul.f32 %v31, 0.003921569
    %v34 = vmul.f32 %v32, 0.003921569
    %35 = vst [vmem:[#allocation5] sm:$0xff] %v33
    %36 = vst [vmem:[#allocation5 + $0x8] sm:$0xff] %v34
    // Predicated region
    $region10: #{tpu_custom_call.1} parent=1 // pred_check
      _
    $region11: #{tpu_custom_call.1} parent=1 // pred_check_branch
      %38 = sbr.rel (0) target = $region13
    $region12: #{tpu_custom_call.1} parent=1 // pred_region
      %40 = vsyncadd [#allocation4], 0
      %s41 = sshll.u32 [#allocation5], 4
      %s42 = int_to_ptr.vmem [resolvable:$true] %s41
      %s43 = sshll.u32 %s1, 4
      %s44 = int_to_ptr.hbm [resolvable:$true] %s43
      %49 = dma.vmem_to_hbm [thread:$0]  %s42, 256, %s44, [#allocation4], 128, 128, 8
    $region13: #{tpu_custom_call.1} parent=1 // pred_fallthru
      _
    // Predicated region
    $region14: #{tpu_custom_call.1} parent=1 // pred_check
      _
    $region15: #{tpu_custom_call.1} parent=1 // pred_check_branch
      %51 = sbr.rel (0) target = $region17
    $region16: #{tpu_custom_call.1} parent=1 // pred_region
      %53 = dma.done [#allocation4], 256
    $region17: #{tpu_custom_call.1} parent=1 // pred_fallthru
      _
    %54 = vsyncpa [#allocation3], 1
    %55 = vsyncpa [#allocation4], 1

</llo_original>
